<compile_context>
chip_gen: v5e
topology: v5e:2x2
jax: 0.10.0
libtpu: 0.0.40
codegen_flags: <defaults>
</compile_context>

<pallas_src>
import jax
import jax.numpy as jnp
from jax.experimental import pallas as pl
from jax.experimental.pallas import tpu as pltpu

_LANE = 128


def _scalar_normalizer_kernel(mean_ref, scale_ref, x_ref, o_ref):
    # mean / scale are (1, 1) f32 scalars in SMEM; scale = 1/sqrt(running_var)
    # is precomputed in the wrapper, so the body is a fused sub+mul and the
    # only binding resource is the HBM DMA.
    mean = mean_ref[0, 0]
    scale = scale_ref[0, 0]
    x = x_ref[...].astype(jnp.float32)
    o_ref[...] = ((x - mean) * scale).astype(o_ref.dtype)


def _round_up(a, b):
    return ((a + b - 1) // b) * b


def _tpu_block_config():
    """Pick (block_bytes, vmem_limit_bytes, dual_core) per TPU generation."""
    try:
        vmem_cap = int(pltpu.get_tpu_info().vmem_capacity_bytes)
    except Exception:
        vmem_cap = 128 << 20  # conservative v5e/v6e-like default
    if vmem_cap <= (96 << 20):
        # v7x-like: 64 MiB VMEM per TensorCore, 2 TCs, fastest HBM -> shortest
        # steps, so amortize overhead with 4 MiB blocks but stay well clear of
        # the 64 MiB physical VMEM (double-buffered in+out = 16 MiB).
        return 4 << 20, 40 << 20, True
    # v5e / v6e: 128 MiB physical VMEM, single TensorCore.  8 MiB blocks
    # (32 MiB double-buffered) need the scoped limit raised above the
    # 16/32 MiB defaults.
    return 8 << 20, 64 << 20, False


def scalar_normalize(x, running_mean, running_var, *, block_bytes=None,
                     min_pallas_elems=262144):
    """ScalarNormalizer.forward (eval): (x - running_mean) / sqrt(running_var).

    Args:
      x:            input array of any shape.
      running_mean: scalar (python float or shape-[1] array).
      running_var:  scalar (python float or shape-[1] array).
      block_bytes:  per-block byte size override (None = auto per generation).
      min_pallas_elems: below this element count, use a fused plain-jnp path.
    """
    orig_shape = x.shape
    dtype = x.dtype
    n = int(x.size)

    mean = jnp.asarray(running_mean, jnp.float32).reshape(())
    var = jnp.asarray(running_var, jnp.float32).reshape(())
    inv_std = jax.lax.rsqrt(var)

    # Pallas path only for f32 / bf16 and lane-divisible sizes; everything
    # else (tiny, ragged, fp16, ints) goes through a single fused XLA
    # elementwise op, which is exactly 1 read + 1 write of HBM anyway.
    kernel_ok = (dtype == jnp.float32) or (dtype == jnp.bfloat16)
    if n < min_pallas_elems or not kernel_ok or n % _LANE != 0:
        y = (x.astype(jnp.float32) - mean) * inv_std
        out_dtype = dtype if jnp.issubdtype(dtype, jnp.floating) else jnp.float32
        return y.astype(out_dtype).reshape(orig_shape)

    itemsize = dtype.itemsize
    rows = n // _LANE
    # Minimum sublane multiple for this dtype's packing: f32 -> 8, bf16 -> 16.
    # Applies to the BLOCK shape only; the array rows need no rounding
    # (partial last block is masked by Pallas).
    min_rows = 8 * (4 // itemsize)

    if block_bytes is None:
        block_bytes, vmem_limit_bytes, dual_core = _tpu_block_config()
    else:
        vmem_limit_bytes = None
        dual_core = False

    bm_rows = max(min_rows,
                  (block_bytes // (_LANE * itemsize)) // min_rows * min_rows)
    bm_eff = min(bm_rows, _round_up(rows, min_rows))
    if dual_core and bm_eff >= rows and rows >= 2 * min_rows:
        # Whole input fits one block: split it in two so both v7x TensorCores
        # participate (skipped on single-core v5e/v6e, where it only adds a
        # grid step).
        bm_eff = _round_up(pl.cdiv(rows, 2), min_rows)

    x2d = x.reshape(rows, _LANE)
    mean_arr = mean.reshape(1, 1)
    scale_arr = inv_std.reshape(1, 1)

    grid = (pl.cdiv(rows, bm_eff),)
    cost = pl.CostEstimate(flops=2 * n, transcendentals=0,
                           bytes_accessed=2 * n * itemsize)

    out2d = pl.pallas_call(
        _scalar_normalizer_kernel,
        out_shape=jax.ShapeDtypeStruct((rows, _LANE), dtype),
        grid=grid,
        in_specs=[
            pl.BlockSpec(memory_space=pltpu.SMEM),  # running_mean   (1, 1)
            pl.BlockSpec(memory_space=pltpu.SMEM),  # 1/sqrt(var)    (1, 1)
            pl.BlockSpec((bm_eff, _LANE), lambda i: (i, 0)),
        ],
        out_specs=pl.BlockSpec((bm_eff, _LANE), lambda i: (i, 0)),
        compiler_params=pltpu.CompilerParams(
            dimension_semantics=("parallel",),
            vmem_limit_bytes=vmem_limit_bytes),
        cost_estimate=cost,
    )(mean_arr, scale_arr, x2d)

    return out2d.reshape(orig_shape)


class ScalarNormalizerPallas:
    """Minimal JAX counterpart of the PyTorch ScalarNormalizer (eval mode)."""

    def __init__(self, init_mean=None, init_std=None, init_num_batches=1000):
        if init_mean is not None:
            assert init_std is not None
            self.running_mean = jnp.array([float(init_mean)], jnp.float32)
            self.running_var = jnp.array([float(init_std) ** 2], jnp.float32)
            self.num_batches_tracked = jnp.array([init_num_batches], jnp.int32)
        else:
            # BatchNorm1d defaults: running_mean=0, running_var=1.
            self.running_mean = jnp.zeros((1,), jnp.float32)
            self.running_var = jnp.ones((1,), jnp.float32)
            self.num_batches_tracked = jnp.array([0], jnp.int32)

    def forward(self, x):
        return scalar_normalize(x, self.running_mean, self.running_var)

    def inverse(self, x):
        # Glue-level elementwise op; kept in plain JAX.
        return x * jnp.sqrt(self.running_var[0]) + self.running_mean[0]


if __name__ == "__main__":
    key = jax.random.PRNGKey(0)
    norm = ScalarNormalizerPallas(init_mean=0.5, init_std=2.0)
    mean, var = norm.running_mean, norm.running_var

    # 1) f32 force-target-like input; force the Pallas path (the default
    #    threshold routes inputs this small to the fused-XLA fallback).
    x = jax.random.normal(key, (4096, 3), dtype=jnp.float32) * 3.0 + 1.0
    y = jax.block_until_ready(
        scalar_normalize(x, mean, var, min_pallas_elems=0))
    ref = (x - 0.5) / 2.0
    assert y.shape == x.shape and y.dtype == x.dtype
    assert jnp.allclose(y, ref, atol=1e-5, rtol=1e-5)

    # 2) bf16 input stays bf16 through HBM (half the DMA bytes).
    xb = x[:2048].astype(jnp.bfloat16)
    yb = jax.block_until_ready(
        scalar_normalize(xb, mean, var, min_pallas_elems=0))
    refb = ((xb.astype(jnp.float32) - 0.5) * 0.5).astype(jnp.bfloat16)
    assert yb.dtype == jnp.bfloat16 and yb.shape == xb.shape
    assert jnp.allclose(yb.astype(jnp.float32), refb.astype(jnp.float32),
                        atol=1e-2, rtol=1e-2)

    # 3) Partial (masked) last block: tiny explicit block forces several grid
    #    steps with a non-multiple row count.
    xp = jax.random.normal(jax.random.PRNGKey(1), (44, 128), jnp.float32)
    yp = jax.block_until_ready(
        scalar_normalize(xp, mean, var, min_pallas_elems=0,
                         block_bytes=8 * 128 * 4))
    assert jnp.allclose(yp, (xp - 0.5) / 2.0, atol=1e-5, rtol=1e-5)

    # 4) Ragged size (n % 128 != 0) / tiny inputs take the fused-XLA fallback.
    xr = jax.random.normal(jax.random.PRNGKey(2), (1000, 3), jnp.float32)
    yr = jax.block_until_ready(norm.forward(xr))
    assert jnp.allclose(yr, (xr - 0.5) / 2.0, atol=1e-5, rtol=1e-5)

    # 5) Integer input promotes to float32 (PyTorch-like), via the fallback.
    xi = jnp.arange(12, dtype=jnp.int32).reshape(4, 3)
    yi = jax.block_until_ready(norm.forward(xi))
    assert yi.dtype == jnp.float32
    assert jnp.allclose(yi, (xi.astype(jnp.float32) - 0.5) / 2.0, atol=1e-5)

    # 6) Round-trip check via inverse.
    x_rec = norm.inverse(y)
    assert jnp.allclose(x_rec, x, atol=1e-4, rtol=1e-4)

    print("KERNEL_OK")
</pallas_src>

<mosaic_0001>
module attributes {stable_mosaic.version = 11 : i64} {
  func.func @_scalar_normalizer_kernel(%arg0: i32, %arg1: memref<1x1xf32, #tpu.memory_space<smem>>, %arg2: memref<1x1xf32, #tpu.memory_space<smem>>, %arg3: memref<96x128xf32, #tpu.memory_space<vmem>>, %arg4: memref<96x128xf32, #tpu.memory_space<vmem>>) attributes {dimension_semantics = [#tpu.dimension_semantics<parallel>], iteration_bounds = array<i64: 1>, scalar_prefetch = 0 : i64, scratch_operands = 0 : i64, tpu.core_type = #tpu.core_type<tc>, window_params = [{transform_indices = @transform_0, window_bounds = array<i64: 1, 1>}, {transform_indices = @transform_1, window_bounds = array<i64: 1, 1>}, {transform_indices = @transform_2, window_bounds = array<i64: 96, 128>}, {transform_indices = @transform_3, window_bounds = array<i64: 96, 128>}]} {
    %c0 = arith.constant 0 : index
    %c0_0 = arith.constant 0 : index
    %0 = memref.load %arg1[%c0, %c0_0] : memref<1x1xf32, #tpu.memory_space<smem>>
    %c0_1 = arith.constant 0 : index
    %c0_2 = arith.constant 0 : index
    %1 = memref.load %arg2[%c0_1, %c0_2] : memref<1x1xf32, #tpu.memory_space<smem>>
    %c0_3 = arith.constant 0 : index
    %c0_4 = arith.constant 0 : index
    %2 = vector.load %arg3[%c0_3, %c0_4] : memref<96x128xf32, #tpu.memory_space<vmem>>, vector<96x128xf32>
    %3 = vector.broadcast %0 : f32 to vector<96x128xf32>
    %4 = arith.subf %2, %3 : vector<96x128xf32>
    %5 = vector.broadcast %1 : f32 to vector<96x128xf32>
    %6 = arith.mulf %4, %5 : vector<96x128xf32>
    %c0_5 = arith.constant 0 : index
    %c0_6 = arith.constant 0 : index
    %7 = vector.load %arg4[%c0_5, %c0_6] : memref<96x128xf32, #tpu.memory_space<vmem>>, vector<96x128xf32>
    tpu.vector_store %arg4[%c0_5, %c0_6], %6 {strides = array<i32>} : memref<96x128xf32, #tpu.memory_space<vmem>>, vector<96x128xf32>,
    return
  }
  func.func @transform_0(%arg0: i32) -> (i32, i32) {
    %c0_i32 = arith.constant 0 : i32
    %c0_i32_0 = arith.constant 0 : i32
    %c0_i32_1 = arith.constant 0 : i32
    return %c0_i32, %c0_i32_0 : i32, i32
  }
  func.func @transform_1(%arg0: i32) -> (i32, i32) {
    %c0_i32 = arith.constant 0 : i32
    %c0_i32_0 = arith.constant 0 : i32
    %c0_i32_1 = arith.constant 0 : i32
    return %c0_i32, %c0_i32_0 : i32, i32
  }
  func.func @transform_2(%arg0: i32) -> (i32, i32) {
    %c0_i32 = arith.constant 0 : i32
    %c0_i32_0 = arith.constant 0 : i32
    return %arg0, %c0_i32 : i32, i32
  }
  func.func @transform_3(%arg0: i32) -> (i32, i32) {
    %c0_i32 = arith.constant 0 : i32
    %c0_i32_0 = arith.constant 0 : i32
    return %arg0, %c0_i32 : i32, i32
  }
}

</mosaic_0001>

<llo_original>
// kernel: tpu_custom_call.1
$region0: #{tpu_custom_call.1}
  #allocation0 [shape = 'u32[]', space=smem, size = 0x4, offset = 0x4, fixed_abs, tag = 'smem constant byte address 0x4 - core index']
  #allocation1 [shape = 'u32[72,128]{1,0:T(1,128)}', space=vmem, size = 0x9000, scoped, tag = 'internal scratch']
  #allocation2 [shape = 'f32[1,1]{1,0:T(1,128)S(6)}', space=smem, size = 0x200, scoped, tag = 'scoped memory for tpu_custom_call.1']
  #allocation3 [shape = 'f32[1,1]{1,0:T(1,128)S(6)}', space=smem, size = 0x200, scoped, tag = 'scoped memory for tpu_custom_call.1']
  %s0 = inlined_call_operand.<no memory space> [shape: f32[1,1], index: 0, kind: input, shape index: {}]
  %s1 = inlined_call_operand.<no memory space> [shape: f32[1,1], index: 1, kind: input, shape index: {}]
  %s2 = inlined_call_operand.hbm [shape: f32[96,128], index: 2, kind: input, shape index: {}]
  %s3 = inlined_call_operand.hbm [shape: f32[96,128], index: 3, kind: output, shape index: {}]
  %s4 = sld [smem:[#allocation0]]
  $region26: #{tpu_custom_call.1} parent=0
    _
  %s6 = ssub.s32 1, %s4
  %s7 = scalar_select 0, %s6, %s4
  %8 = sst [smem:[#allocation2]] %s0
  %9 = sst [smem:[#allocation3]] %s1
  $region1: #{tpu_custom_call.1} parent=0
    #allocation4 [shape = 'u8[49152]{0}', space=vmem, size = 0xc000, scoped, tag = 'input window, operand 2, single buffered']
    #allocation5 [shape = 's32[1]{0}', space=sflag, size = 0x4, scoped, tag = 'scoped memory for tpu_custom_call.1']
    #allocation6 [shape = 's32[1]{0}', space=sflag, size = 0x4, scoped, tag = 'scoped memory for tpu_custom_call.1']
    #allocation7 [shape = 'u8[49152]{0}', space=vmem, size = 0xc000, scoped, tag = 'output window, operand 0, single buffered']
    %10 = vsyncpa [#allocation5], 0
    %11 = vsyncpa [#allocation6], 0
    // Predicated region
    $region2: #{tpu_custom_call.1} parent=1 // pred_check
      _
    $region3: #{tpu_custom_call.1} parent=1 // pred_check_branch
      %13 = sbr.rel (0) target = $region5
    $region4: #{tpu_custom_call.1} parent=1 // pred_region
      _
    $region5: #{tpu_custom_call.1} parent=1 // pred_fallthru
      _
    // Predicated region
    $region6: #{tpu_custom_call.1} parent=1 // pred_check
      _
    $region7: #{tpu_custom_call.1} parent=1 // pred_check_branch
      %15 = sbr.rel (0) target = $region9
    $region8: #{tpu_custom_call.1} parent=1 // pred_region
      _
    $region9: #{tpu_custom_call.1} parent=1 // pred_fallthru
      _
    // Predicated region
    $region10: #{tpu_custom_call.1} parent=1 // pred_check
      _
    $region11: #{tpu_custom_call.1} parent=1 // pred_check_branch
      %17 = sbr.rel (0) target = $region13
    $region12: #{tpu_custom_call.1} parent=1 // pred_region
      %19 = vsyncadd [#allocation5], 0
      %s20 = sshll.u32 %s2, 4
      %s21 = int_to_ptr.hbm [resolvable:$true] %s20
      %s22 = sshll.u32 [#allocation4], 4
      %s23 = int_to_ptr.vmem [resolvable:$true] %s22
      %28 = dma.hbm_to_vmem [thread:$0]  %s21, 1536, %s23, [#allocation5], 128, 128, 8
    $region13: #{tpu_custom_call.1} parent=1 // pred_fallthru
      _
    // Predicated region
    $region14: #{tpu_custom_call.1} parent=1 // pred_check
      _
    $region15: #{tpu_custom_call.1} parent=1 // pred_check_branch
      %30 = sbr.rel (0) target = $region17
    $region16: #{tpu_custom_call.1} parent=1 // pred_region
      %32 = dma.done [#allocation5], 1536
    $region17: #{tpu_custom_call.1} parent=1 // pred_fallthru
      _
    %s33 = sld [smem:[#allocation2]]
    %s34 = sld [smem:[#allocation3]]
    %v35 = vld [vmem:[#allocation4] sm:$0xff]
    %v36 = vld [vmem:[#allocation4 + $0x8] sm:$0xff]
    %v37 = vld [vmem:[#allocation4 + $0x10] sm:$0xff]
    %v38 = vld [vmem:[#allocation4 + $0x18] sm:$0xff]
    %v39 = vld [vmem:[#allocation4 + $0x20] sm:$0xff]
    %v40 = vld [vmem:[#allocation4 + $0x28] sm:$0xff]
    %v41 = vld [vmem:[#allocation4 + $0x30] sm:$0xff]
    %v42 = vld [vmem:[#allocation4 + $0x38] sm:$0xff]
    %v43 = vld [vmem:[#allocation4 + $0x40] sm:$0xff]
    %v44 = vld [vmem:[#allocation4 + $0x48] sm:$0xff]
    %v45 = vld [vmem:[#allocation4 + $0x50] sm:$0xff]
    %v46 = vld [vmem:[#allocation4 + $0x58] sm:$0xff]
    %v47 = vstv %s33
    %v48 = vsub.f32 %v35, %v47
    %v49 = vsub.f32 %v36, %v47
    %v50 = vsub.f32 %v37, %v47
    %v51 = vsub.f32 %v38, %v47
    %v52 = vsub.f32 %v39, %v47
    %v53 = vsub.f32 %v40, %v47
    %v54 = vsub.f32 %v41, %v47
    %v55 = vsub.f32 %v42, %v47
    %v56 = vsub.f32 %v43, %v47
    %v57 = vsub.f32 %v44, %v47
    %v58 = vsub.f32 %v45, %v47
    %v59 = vsub.f32 %v46, %v47
    %v60 = vstv %s34
    %v61 = vmul.f32 %v48, %v60
    %v62 = vmul.f32 %v49, %v60
    %v63 = vmul.f32 %v50, %v60
    %v64 = vmul.f32 %v51, %v60
    %v65 = vmul.f32 %v52, %v60
    %v66 = vmul.f32 %v53, %v60
    %v67 = vmul.f32 %v54, %v60
    %v68 = vmul.f32 %v55, %v60
    %v69 = vmul.f32 %v56, %v60
    %v70 = vmul.f32 %v57, %v60
    %v71 = vmul.f32 %v58, %v60
    %v72 = vmul.f32 %v59, %v60
    %73 = vst [vmem:[#allocation7] sm:$0xff] %v61
    %74 = vst [vmem:[#allocation7 + $0x8] sm:$0xff] %v62
    %75 = vst [vmem:[#allocation7 + $0x10] sm:$0xff] %v63
    %76 = vst [vmem:[#allocation7 + $0x18] sm:$0xff] %v64
    %77 = vst [vmem:[#allocation7 + $0x20] sm:$0xff] %v65
    %78 = vst [vmem:[#allocation7 + $0x28] sm:$0xff] %v66
    %79 = vst [vmem:[#allocation7 + $0x30] sm:$0xff] %v67
    %80 = vst [vmem:[#allocation7 + $0x38] sm:$0xff] %v68
    %81 = vst [vmem:[#allocation7 + $0x40] sm:$0xff] %v69
    %82 = vst [vmem:[#allocation7 + $0x48] sm:$0xff] %v70
    %83 = vst [vmem:[#allocation7 + $0x50] sm:$0xff] %v71
    %84 = vst [vmem:[#allocation7 + $0x58] sm:$0xff] %v72
    // Predicated region
    $region18: #{tpu_custom_call.1} parent=1 // pred_check
      _
    $region19: #{tpu_custom_call.1} parent=1 // pred_check_branch
      %86 = sbr.rel (0) target = $region21
    $region20: #{tpu_custom_call.1} parent=1 // pred_region
      %88 = vsyncadd [#allocation6], 0
      %s89 = sshll.u32 [#allocation7], 4
      %s90 = int_to_ptr.vmem [resolvable:$true] %s89
      %s91 = sshll.u32 %s3, 4
      %s92 = int_to_ptr.hbm [resolvable:$true] %s91
      %97 = dma.vmem_to_hbm [thread:$0]  %s90, 1536, %s92, [#allocation6], 128, 128, 8
    $region21: #{tpu_custom_call.1} parent=1 // pred_fallthru
      _
    // Predicated region
    $region22: #{tpu_custom_call.1} parent=1 // pred_check
      _
    $region23: #{tpu_custom_call.1} parent=1 // pred_check_branch
      %99 = sbr.rel (0) target = $region25
    $region24: #{tpu_custom_call.1} parent=1 // pred_region
      %101 = dma.done [#allocation6], 1536
    $region25: #{tpu_custom_call.1} parent=1 // pred_fallthru
      _
    %102 = vsyncpa [#allocation5], 1
    %103 = vsyncpa [#allocation6], 1

</llo_original>
